<compile_context>
chip_gen: v5e
topology: v5e:2x2
jax: 0.10.0
libtpu: 0.0.40
codegen_flags: <defaults>
</compile_context>

<pallas_src>
import functools

import jax
import jax.numpy as jnp
from jax import lax
from jax.experimental import pallas as pl
from jax.experimental.pallas import tpu as pltpu

ALPHA = 0.25
GAMMA = 2.0
IGNORE_INDEX = 255

LANES = 128
ACC_ROWS = 8           # accumulator slab = one (8,128) f32 vreg
MAX_TILE_ROWS = 4096   # (4096,128) f32 = 2 MiB per input per pipeline buffer
CHUNK_ROWS = 512       # in-kernel accumulation chunk (bounds VMEM temporaries)


def _num_tensorcores():
    """2 only on dual-TensorCore chips (v7x); v5e/v6e are single-TC devices."""
    try:
        kind = jax.devices()[0].device_kind.lower()
    except Exception:
        return 1
    return 2 if ("v7" in kind or "7x" in kind) else 1


def _dimension_semantics(num_cores):
    if num_cores > 1 and hasattr(pltpu, "CORE_PARALLEL"):
        # Review feedback: plain "parallel" may not shard across TensorCores;
        # CORE_PARALLEL is the semantics that actually changes codegen.
        return (pltpu.CORE_PARALLEL, pltpu.ARBITRARY)
    if num_cores > 1:
        return ("parallel", "arbitrary")
    return ("arbitrary", "arbitrary")


def _vmem_limit_bytes():
    try:
        cap = int(getattr(pltpu.get_tpu_info(), "vmem_capacity_bytes", 64 << 20))
    except Exception:
        cap = 64 << 20
    # Leave headroom under physical VMEM: v5e/v6e (128 MiB) -> 96 MiB,
    # v7x (64 MiB) -> 48 MiB.
    return max(32 << 20, min(cap - (16 << 20), 96 << 20))


NUM_CORES = _num_tensorcores()
VMEM_LIMIT_BYTES = _vmem_limit_bytes()


def _fold_rows(x):
    """(R, 128) -> (8, 128) partial sums using only cross-vreg VPU adds."""
    r, c = x.shape
    if r % ACC_ROWS == 0:
        return jnp.sum(x.reshape(r // ACC_ROWS, ACC_ROWS, c), axis=0)
    # Tiny-input fallback (R not a multiple of 8): sublane reduce into row 0.
    s = jnp.broadcast_to(jnp.sum(x, axis=0, keepdims=True), (ACC_ROWS, c))
    row = lax.broadcasted_iota(jnp.int32, (ACC_ROWS, c), 0)
    return jnp.where(row == 0, s, jnp.zeros_like(s))


def _segloss_kernel(preds_ref, labels_ref, out_ref, sum_acc, cnt_acc, *,
                    total_rows, tile_rows, chunk_rows, n_full_blocks,
                    total_steps):
    c = pl.program_id(0)
    i = pl.program_id(1)
    steps = pl.num_programs(1)
    blk = c * steps + i                      # un-clamped global block id

    @pl.when(i == 0)
    def _():
        sum_acc[...] = jnp.zeros_like(sum_acc)
        cnt_acc[...] = jnp.zeros_like(cnt_acc)

    n_chunks = tile_rows // chunk_rows
    ignore = jnp.asarray(IGNORE_INDEX, dtype=labels_ref.dtype)

    def chunk_contrib(r0, mask_rows):
        # Labels stay in their source dtype (uint8 / bf16 / f32 ...); the
        # compare and the cast to f32 happen here, on VMEM-resident data.
        x = preds_ref[pl.ds(r0, chunk_rows), :].astype(jnp.float32)
        y = labels_ref[pl.ds(r0, chunk_rows), :]
        keep = y != ignore
        if mask_rows:
            # Boundary / clamped block: also drop rows past the end of the
            # array (their VMEM contents are stale garbage).
            row = (blk * tile_rows + r0 +
                   lax.broadcasted_iota(jnp.int32, (chunk_rows, LANES), 0))
            keep = keep & (row < total_rows)
        # Numerically stable BCE-with-logits (same formula PyTorch uses).
        bce = (jnp.maximum(x, 0.0) - x * y.astype(jnp.float32)
               + jnp.log1p(jnp.exp(-jnp.abs(x))))
        m = jnp.where(keep, 1.0, 0.0)         # reused for the element count
        s = jnp.where(keep, bce, 0.0)         # NaN-safe w.r.t. garbage lanes
        return _fold_rows(s), _fold_rows(m)

    def tile_body(mask_rows):
        if n_chunks <= 1:
            ds_, dm_ = chunk_contrib(0, mask_rows)
            sum_acc[...] += ds_
            cnt_acc[...] += dm_
        else:
            def body(ch, carry):
                acc_s, acc_m = carry
                r0 = pl.multiple_of(ch * chunk_rows, chunk_rows)
                ds_, dm_ = chunk_contrib(r0, mask_rows)
                return acc_s + ds_, acc_m + dm_
            zero = jnp.zeros((ACC_ROWS, LANES), jnp.float32)
            acc_s, acc_m = lax.fori_loop(0, n_chunks, body, (zero, zero))
            sum_acc[...] += acc_s
            cnt_acc[...] += acc_m

    if n_full_blocks >= total_steps:
        # Every grid step sees a fully in-range tile: cheap path everywhere.
        tile_body(mask_rows=False)
    else:
        @pl.when(blk < n_full_blocks)
        def _():
            tile_body(mask_rows=False)

        @pl.when(blk >= n_full_blocks)
        def _():
            tile_body(mask_rows=True)

    @pl.when(i == steps - 1)
    def _():
        out_ref[0, 0:ACC_ROWS, :] = sum_acc[...]
        out_ref[0, ACC_ROWS:2 * ACC_ROWS, :] = cnt_acc[...]


def _masked_sums_pallas(p2, l2, max_tile_rows):
    """Returns (sum of masked BCE, count of masked elems) over a (rows,128) view."""
    rows = p2.shape[0]
    tile_rows = min(rows, max_tile_rows)
    n_blocks = pl.cdiv(rows, tile_rows)
    steps = pl.cdiv(n_blocks, NUM_CORES)
    last_block = n_blocks - 1
    n_full_blocks = rows // tile_rows
    total_steps = NUM_CORES * steps

    chunk_rows = min(CHUNK_ROWS, tile_rows)
    if tile_rows % chunk_rows:
        chunk_rows = tile_rows

    def row_map(c, i):
        # Clamp: a core whose range runs past the end re-reads the last block
        # (its contribution is fully masked in-kernel) instead of an OOB DMA.
        return (jnp.minimum(c * steps + i, last_block), 0)

    kernel = functools.partial(
        _segloss_kernel,
        total_rows=rows, tile_rows=tile_rows, chunk_rows=chunk_rows,
        n_full_blocks=n_full_blocks, total_steps=total_steps)

    partials = pl.pallas_call(
        kernel,
        out_shape=jax.ShapeDtypeStruct((NUM_CORES, 2 * ACC_ROWS, LANES),
                                       jnp.float32),
        grid_spec=pltpu.PrefetchScalarGridSpec(
            num_scalar_prefetch=0,
            grid=(NUM_CORES, steps),
            in_specs=[
                pl.BlockSpec((tile_rows, LANES), row_map),
                pl.BlockSpec((tile_rows, LANES), row_map),
            ],
            out_specs=pl.BlockSpec((1, 2 * ACC_ROWS, LANES),
                                   lambda c, i: (c, 0, 0)),
            scratch_shapes=[
                pltpu.VMEM((ACC_ROWS, LANES), jnp.float32),
                pltpu.VMEM((ACC_ROWS, LANES), jnp.float32),
            ],
        ),
        compiler_params=pltpu.CompilerParams(
            dimension_semantics=_dimension_semantics(NUM_CORES),
            vmem_limit_bytes=VMEM_LIMIT_BYTES,
        ),
    )(p2, l2)

    return (jnp.sum(partials[:, :ACC_ROWS, :]),
            jnp.sum(partials[:, ACC_ROWS:, :]))


def _xla_masked_sums(p, l):
    """Plain-XLA masked BCE sum/count for the tiny ragged tail (< 128 elems)."""
    keep = l != jnp.asarray(IGNORE_INDEX, dtype=l.dtype)
    x = p.astype(jnp.float32)
    y = l.astype(jnp.float32)
    bce = jnp.maximum(x, 0.0) - x * y + jnp.log1p(jnp.exp(-jnp.abs(x)))
    return jnp.sum(jnp.where(keep, bce, 0.0)), jnp.sum(keep.astype(jnp.float32))


@functools.partial(jax.jit, static_argnames=("max_tile_rows",))
def seg_loss(preds, labels, max_tile_rows=MAX_TILE_ROWS):
    """Scalar SegLoss.  preds/labels: matching shapes; labels may be any dtype
    that can represent ignore_index=255 (f32 / bf16 / uint8 / int32 / ...)."""
    p = jnp.ravel(preds)
    l = jnp.ravel(labels)
    if not jnp.issubdtype(p.dtype, jnp.floating):
        p = p.astype(jnp.float32)
    if l.dtype in (jnp.dtype(jnp.int8), jnp.dtype(jnp.bool_)):
        l = l.astype(jnp.int32)      # int8 / bool cannot represent 255

    n = p.shape[0]
    rem = n % LANES
    total = jnp.zeros((), jnp.float32)
    count = jnp.zeros((), jnp.float32)

    if rem:
        # Ragged tail: reduce the last (<128) elements in plain XLA instead of
        # padding the whole array to a lane multiple.
        ts, tc = _xla_masked_sums(p[n - rem:], l[n - rem:])
        total += ts
        count += tc
        # TODO(synk): this prefix slice still costs one bulk copy when
        # n % 128 != 0; removing it entirely needs a manual 1-D HBM DMA path
        # (memory_space=pl.ANY).  Segmentation-map numels are almost always a
        # multiple of 128, so this branch rarely triggers.
        p = p[: n - rem]
        l = l[: n - rem]

    rows = (n - rem) // LANES
    if rows > 0:
        ks, kc = _masked_sums_pallas(p.reshape(rows, LANES),
                                     l.reshape(rows, LANES),
                                     max_tile_rows)
        total += ks
        count += kc

    # Once-per-call scalar focal epilogue (plain XLA).  NaN if every label is
    # ignore_index, matching the PyTorch reference.
    mean_bce = total / count
    logpt = -mean_bce
    pt = jnp.exp(logpt)
    one_minus_pt = 1.0 - pt
    focal = one_minus_pt * one_minus_pt if GAMMA == 2.0 else one_minus_pt ** GAMMA
    return -focal * ALPHA * logpt


def _reference(preds, labels):
    p = jnp.ravel(preds).astype(jnp.float32)
    l = jnp.ravel(labels).astype(jnp.float32)
    mask = l != jnp.float32(IGNORE_INDEX)
    bce = jnp.maximum(p, 0.0) - p * l + jnp.log1p(jnp.exp(-jnp.abs(p)))
    mean_bce = jnp.sum(jnp.where(mask, bce, 0.0)) / jnp.sum(mask.astype(jnp.float32))
    logpt = -mean_bce
    pt = jnp.exp(logpt)
    return -((1.0 - pt) ** GAMMA) * ALPHA * logpt


def _check(preds, labels, name, **kw):
    out = jax.block_until_ready(seg_loss(preds, labels, **kw))
    ref = jax.block_until_ready(_reference(preds, labels))
    assert jnp.allclose(out, ref, rtol=1e-4, atol=1e-6), (name, out, ref)


if __name__ == "__main__":
    key = jax.random.PRNGKey(0)
    keys = jax.random.split(key, 12)

    def make(kp, kl, ki, shape, label_dtype=jnp.float32):
        preds = jax.random.normal(kp, shape, jnp.float32)
        lab = jax.random.bernoulli(kl, 0.5, shape).astype(label_dtype)
        ign = jax.random.bernoulli(ki, 0.1, shape)
        lab = jnp.where(ign, jnp.asarray(IGNORE_INDEX, label_dtype), lab)
        return preds, lab

    # 1) Canonical NCHW float labels (zero-copy path, interior tiles only).
    p1, l1 = make(keys[0], keys[1], keys[2], (2, 4, 16, 16))
    _check(p1, l1, "f32")

    # 2) uint8 labels streamed narrow (compare / cast done in-kernel).
    p2, l2 = make(keys[3], keys[4], keys[5], (2, 4, 32, 32), jnp.uint8)
    _check(p2, l2, "uint8")

    # 3) Ragged numel (not a multiple of 128): tail reduced in plain XLA.
    p3, l3 = make(keys[6], keys[7], keys[8], (2, 3, 179))
    _check(p3, l3, "ragged")

    # 4) Partial boundary block (exercises the masked in-kernel path).
    p4, l4 = make(keys[9], keys[10], keys[11], (4, 5, 8, 16))
    _check(p4, l4, "boundary", max_tile_rows=8)

    # 5) Multi-chunk tile (exercises the in-kernel fori_loop accumulation).
    p5, l5 = make(keys[0], keys[4], keys[8], (2, 4, 128, 128))
    _check(p5, l5, "chunked")

    print("KERNEL_OK")
</pallas_src>

<mosaic_0001>
module attributes {stable_mosaic.version = 11 : i64} {
  func.func @_segloss_kernel(%arg0: i32, %arg1: i32, %arg2: memref<16x128xf32, #tpu.memory_space<vmem>>, %arg3: memref<16x128xf32, #tpu.memory_space<vmem>>, %arg4: memref<1x16x128xf32, #tpu.memory_space<vmem>>, %arg5: memref<8x128xf32, #tpu.memory_space<vmem>>, %arg6: memref<8x128xf32, #tpu.memory_space<vmem>>) attributes {dimension_semantics = [#tpu.dimension_semantics<arbitrary>, #tpu.dimension_semantics<arbitrary>], iteration_bounds = array<i64: 1, 1>, scalar_prefetch = 0 : i64, scratch_operands = 2 : i64, tpu.core_type = #tpu.core_type<tc>, window_params = [{transform_indices = @transform_0, window_bounds = array<i64: 16, 128>}, {transform_indices = @transform_1, window_bounds = array<i64: 16, 128>}, {transform_indices = @transform_2, window_bounds = array<i64: 1, 16, 128>}]} {
    %c0_i32 = arith.constant 0 : i32
    %0 = arith.cmpi eq, %arg1, %c0_i32 : i32
    %1 = arith.extui %0 : i1 to i32
    %c0_i32_0 = arith.constant 0 : i32
    %2 = arith.cmpi ne, %1, %c0_i32_0 : i32
    scf.if %2 {
      %cst_21 = arith.constant 0.000000e+00 : f32
      %35 = vector.broadcast %cst_21 : f32 to vector<8x128xf32>
      %c0_22 = arith.constant 0 : index
      %c0_23 = arith.constant 0 : index
      %36 = vector.load %arg5[%c0_22, %c0_23] : memref<8x128xf32, #tpu.memory_space<vmem>>, vector<8x128xf32>
      tpu.vector_store %arg5[%c0_22, %c0_23], %35 {strides = array<i32>} : memref<8x128xf32, #tpu.memory_space<vmem>>, vector<8x128xf32>,
      %cst_24 = arith.constant 0.000000e+00 : f32
      %37 = vector.broadcast %cst_24 : f32 to vector<8x128xf32>
      %c0_25 = arith.constant 0 : index
      %c0_26 = arith.constant 0 : index
      %38 = vector.load %arg6[%c0_25, %c0_26] : memref<8x128xf32, #tpu.memory_space<vmem>>, vector<8x128xf32>
      tpu.vector_store %arg6[%c0_25, %c0_26], %37 {strides = array<i32>} : memref<8x128xf32, #tpu.memory_space<vmem>>, vector<8x128xf32>,
    } else {
    }
    %c0 = arith.constant 0 : index
    %c0_1 = arith.constant 0 : index
    %3 = vector.load %arg2[%c0, %c0_1] : memref<16x128xf32, #tpu.memory_space<vmem>>, vector<16x128xf32>
    %c0_2 = arith.constant 0 : index
    %c0_3 = arith.constant 0 : index
    %4 = vector.load %arg3[%c0_2, %c0_3] : memref<16x128xf32, #tpu.memory_space<vmem>>, vector<16x128xf32>
    %cst = arith.constant 2.550000e+02 : f32
    %5 = vector.broadcast %cst : f32 to vector<16x128xf32>
    %6 = arith.cmpf one, %4, %5 : vector<16x128xf32>
    %cst_4 = arith.constant 0.000000e+00 : f32
    %7 = vector.broadcast %cst_4 : f32 to vector<16x128xf32>
    %8 = arith.maximumf %3, %7 : vector<16x128xf32>
    %9 = arith.mulf %3, %4 : vector<16x128xf32>
    %10 = arith.subf %8, %9 : vector<16x128xf32>
    %11 = math.absf %3 : vector<16x128xf32>
    %cst_5 = arith.constant 0.000000e+00 : f32
    %12 = vector.broadcast %cst_5 : f32 to vector<16x128xf32>
    %13 = arith.subf %12, %11 : vector<16x128xf32>
    %14 = math.exp %13 : vector<16x128xf32>
    %15 = math.log1p %14 : vector<16x128xf32>
    %16 = arith.addf %10, %15 : vector<16x128xf32>
    %cst_6 = arith.constant 1.000000e+00 : f32
    %cst_7 = arith.constant 0.000000e+00 : f32
    %17 = vector.broadcast %cst_6 : f32 to vector<16x128xf32>
    %18 = vector.broadcast %cst_7 : f32 to vector<16x128xf32>
    %19 = arith.select %6, %17, %18 : vector<16x128xi1>, vector<16x128xf32>
    %cst_8 = arith.constant 0.000000e+00 : f32
    %20 = vector.broadcast %cst_8 : f32 to vector<16x128xf32>
    %21 = arith.select %6, %16, %20 : vector<16x128xi1>, vector<16x128xf32>
    %22 = vector.shape_cast %21 : vector<16x128xf32> to vector<2x8x128xf32>
    %cst_9 = arith.constant dense<0.000000e+00> : vector<8x128xf32>
    %23 = vector.multi_reduction <add>, %22, %cst_9 [0] : vector<2x8x128xf32> to vector<8x128xf32>
    %24 = vector.shape_cast %19 : vector<16x128xf32> to vector<2x8x128xf32>
    %cst_10 = arith.constant dense<0.000000e+00> : vector<8x128xf32>
    %25 = vector.multi_reduction <add>, %24, %cst_10 [0] : vector<2x8x128xf32> to vector<8x128xf32>
    %c0_11 = arith.constant 0 : index
    %c0_12 = arith.constant 0 : index
    %26 = vector.load %arg5[%c0_11, %c0_12] : memref<8x128xf32, #tpu.memory_space<vmem>>, vector<8x128xf32>
    %27 = arith.addf %26, %23 : vector<8x128xf32>
    %c0_13 = arith.constant 0 : index
    %c0_14 = arith.constant 0 : index
    %28 = vector.load %arg5[%c0_13, %c0_14] : memref<8x128xf32, #tpu.memory_space<vmem>>, vector<8x128xf32>
    tpu.vector_store %arg5[%c0_13, %c0_14], %27 {strides = array<i32>} : memref<8x128xf32, #tpu.memory_space<vmem>>, vector<8x128xf32>,
    %c0_15 = arith.constant 0 : index
    %c0_16 = arith.constant 0 : index
    %29 = vector.load %arg6[%c0_15, %c0_16] : memref<8x128xf32, #tpu.memory_space<vmem>>, vector<8x128xf32>
    %30 = arith.addf %29, %25 : vector<8x128xf32>
    %c0_17 = arith.constant 0 : index
    %c0_18 = arith.constant 0 : index
    %31 = vector.load %arg6[%c0_17, %c0_18] : memref<8x128xf32, #tpu.memory_space<vmem>>, vector<8x128xf32>
    tpu.vector_store %arg6[%c0_17, %c0_18], %30 {strides = array<i32>} : memref<8x128xf32, #tpu.memory_space<vmem>>, vector<8x128xf32>,
    %c0_i32_19 = arith.constant 0 : i32
    %32 = arith.cmpi eq, %arg1, %c0_i32_19 : i32
    %33 = arith.extui %32 : i1 to i32
    %c0_i32_20 = arith.constant 0 : i32
    %34 = arith.cmpi ne, %33, %c0_i32_20 : i32
    scf.if %34 {
      %c0_21 = arith.constant 0 : index
      %c0_22 = arith.constant 0 : index
      %35 = vector.load %arg5[%c0_21, %c0_22] : memref<8x128xf32, #tpu.memory_space<vmem>>, vector<8x128xf32>
      %c0_23 = arith.constant 0 : index
      %c0_24 = arith.constant 0 : index
      %c0_25 = arith.constant 0 : index
      %36 = vector.load %arg4[%c0_23, %c0_24, %c0_25] : memref<1x16x128xf32, #tpu.memory_space<vmem>>, vector<1x8x128xf32>
      %37 = vector.shape_cast %36 : vector<1x8x128xf32> to vector<8x128xf32>
      %38 = vector.shape_cast %35 : vector<8x128xf32> to vector<1x8x128xf32>
      tpu.vector_store %arg4[%c0_23, %c0_24, %c0_25], %38 {strides = array<i32>} : memref<1x16x128xf32, #tpu.memory_space<vmem>>, vector<1x8x128xf32>,
      %c0_26 = arith.constant 0 : index
      %c0_27 = arith.constant 0 : index
      %39 = vector.load %arg6[%c0_26, %c0_27] : memref<8x128xf32, #tpu.memory_space<vmem>>, vector<8x128xf32>
      %c0_28 = arith.constant 0 : index
      %c8 = arith.constant 8 : index
      %c0_29 = arith.constant 0 : index
      %40 = vector.load %arg4[%c0_28, %c8, %c0_29] : memref<1x16x128xf32, #tpu.memory_space<vmem>>, vector<1x8x128xf32>
      %41 = vector.shape_cast %40 : vector<1x8x128xf32> to vector<8x128xf32>
      %42 = vector.shape_cast %39 : vector<8x128xf32> to vector<1x8x128xf32>
      tpu.vector_store %arg4[%c0_28, %c8, %c0_29], %42 {strides = array<i32>} : memref<1x16x128xf32, #tpu.memory_space<vmem>>, vector<1x8x128xf32>,
    } else {
    }
    return
  }
  func.func @transform_0(%arg0: i32, %arg1: i32) -> (i32, i32) {
    %c1_i32 = arith.constant 1 : i32
    %0 = arith.muli %arg0, %c1_i32 : i32
    %1 = arith.addi %0, %arg1 : i32
    %c0_i32 = arith.constant 0 : i32
    %2 = arith.minsi %1, %c0_i32 : i32
    %c0_i32_0 = arith.constant 0 : i32
    %c0_i32_1 = arith.constant 0 : i32
    return %2, %c0_i32_0 : i32, i32
  }
  func.func @transform_1(%arg0: i32, %arg1: i32) -> (i32, i32) {
    %c1_i32 = arith.constant 1 : i32
    %0 = arith.muli %arg0, %c1_i32 : i32
    %1 = arith.addi %0, %arg1 : i32
    %c0_i32 = arith.constant 0 : i32
    %2 = arith.minsi %1, %c0_i32 : i32
    %c0_i32_0 = arith.constant 0 : i32
    %c0_i32_1 = arith.constant 0 : i32
    return %2, %c0_i32_0 : i32, i32
  }
  func.func @transform_2(%arg0: i32, %arg1: i32) -> (i32, i32, i32) {
    %c0_i32 = arith.constant 0 : i32
    %c0_i32_0 = arith.constant 0 : i32
    %c0_i32_1 = arith.constant 0 : i32
    return %arg0, %c0_i32, %c0_i32_0 : i32, i32, i32
  }
}

</mosaic_0001>

<llo_original>
// kernel: seg_loss.1
$region0: #{seg_loss.1}
  #allocation0 [shape = 'u32[]', space=smem, size = 0x4, offset = 0x4, fixed_abs, tag = 'smem constant byte address 0x4 - core index']
  #allocation1 [shape = 'u32[72,128]{1,0:T(1,128)}', space=vmem, size = 0x9000, scoped, tag = 'internal scratch']
  #allocation2 [shape = 'f32[8,128]{1,0:T(8,128)}', space=vmem, size = 0x1000, scoped, tag = 'scratch operand']
  #allocation3 [shape = 'f32[8,128]{1,0:T(8,128)}', space=vmem, size = 0x1000, scoped, tag = 'scratch operand']
  %s0 = inlined_call_operand.vmem [shape: f32[16,128], index: 0, kind: input, shape index: {}]
  %s1 = inlined_call_operand.vmem [shape: f32[16,128], index: 1, kind: input, shape index: {}]
  %s2 = inlined_call_operand.vmem [shape: f32[1,16,128], index: 2, kind: output, shape index: {}]
  %s3 = sld [smem:[#allocation0]]
  $region26: #{seg_loss.1} parent=0
    _
  %s5 = ssub.s32 1, %s3
  %s6 = scalar_select 0, %s5, %s3
  // Predicated region
  $region2: #{seg_loss.1} parent=0 // pred_check
    _
  $region3: #{seg_loss.1} parent=0 // pred_check_branch
    %8 = sbr.rel (0) target = $region5
  $region4: #{seg_loss.1} parent=0 // pred_region
    %s9 = sadd.s32 0, 0
    %p10 = scmp.lt.s32.totalorder %s9, 0
    %s11 = scalar_select %p10, %s9, 0
    %s12 = smul.u32 2, %s11
    %p13 = scmp.lt.s32.totalorder %s12, 1
    %s14 = scalar_select %p13, %s12, 1
    %s15 = smul.addr %s14, 8
    %s16 = scalar_lea.vmem %s0, %s15
    %s17 = sadd.s32 0, 0
    %p18 = scmp.lt.s32.totalorder %s17, 0
    %s19 = scalar_select %p18, %s17, 0
    %s20 = smul.u32 2, %s19
  $region5: #{seg_loss.1} parent=0 // pred_fallthru
    _
  // Predicated region
  $region6: #{seg_loss.1} parent=0 // pred_check
    _
  $region7: #{seg_loss.1} parent=0 // pred_check_branch
    %22 = sbr.rel (0) target = $region9
  $region8: #{seg_loss.1} parent=0 // pred_region
    %s23 = sadd.s32 0, 0
    %p24 = scmp.lt.s32.totalorder %s23, 0
    %s25 = scalar_select %p24, %s23, 0
    %s26 = smul.u32 2, %s25
    %p27 = scmp.lt.s32.totalorder %s26, 1
    %s28 = scalar_select %p27, %s26, 1
    %s29 = smul.addr %s28, 8
    %s30 = scalar_lea.vmem %s1, %s29
    %s31 = sadd.s32 0, 0
    %p32 = scmp.lt.s32.totalorder %s31, 0
    %s33 = scalar_select %p32, %s31, 0
    %s34 = smul.u32 2, %s33
  $region9: #{seg_loss.1} parent=0 // pred_fallthru
    _
  %s35 = sadd.s32 0, 0
  %p36 = scmp.lt.s32.totalorder %s35, 0
  %s37 = scalar_select %p36, %s35, 0
  %s38 = smul.u32 2, %s37
  %p39 = scmp.lt.s32.totalorder %s38, 1
  %s40 = scalar_select %p39, %s38, 1
  %s41 = smul.addr %s40, 8
  %s42 = scalar_lea.vmem %s0, %s41
  %s43 = sadd.s32 0, 0
  %p44 = scmp.lt.s32.totalorder %s43, 0
  %s45 = scalar_select %p44, %s43, 0
  %s46 = smul.u32 2, %s45
  %p47 = scmp.lt.s32.totalorder %s46, 1
  %s48 = scalar_select %p47, %s46, 1
  %s49 = smul.addr %s48, 8
  %s50 = scalar_lea.vmem %s1, %s49
  %s51 = sadd.s32 0, 0
  %p52 = scmp.lt.s32.totalorder %s51, 0
  %s53 = scalar_select %p52, %s51, 0
  %s54 = smul.u32 2, %s53
  %p55 = scmp.lt.s32.totalorder %s54, 1
  %s56 = scalar_select %p55, %s54, 1
  %s57 = smul.addr %s56, 8
  %s58 = scalar_lea.vmem %s0, %s57
  %s59 = sadd.s32 0, 0
  %p60 = scmp.lt.s32.totalorder %s59, 0
  %s61 = scalar_select %p60, %s59, 0
  %s62 = smul.u32 2, %s61
  %s63 = sadd.s32 0, 0
  %p64 = scmp.lt.s32.totalorder %s63, 0
  %s65 = scalar_select %p64, %s63, 0
  %s66 = smul.u32 2, %s65
  %p67 = scmp.lt.s32.totalorder %s66, 1
  %s68 = scalar_select %p67, %s66, 1
  %s69 = smul.addr %s68, 8
  %s70 = scalar_lea.vmem %s1, %s69
  %s71 = sadd.s32 0, 0
  %p72 = scmp.lt.s32.totalorder %s71, 0
  %s73 = scalar_select %p72, %s71, 0
  %s74 = smul.u32 2, %s73
  %p75 = scmp.eq.s32.totalorder 0, 0
  // Predicated region
  $region10: #{seg_loss.1} parent=0 // pred_check
    %p76 = pneg %p75
  $region11: #{seg_loss.1} parent=0 // pred_check_branch
    %78 = sbr.rel (%p76) target = $region13
  $region12: #{seg_loss.1} parent=0 // pred_region
    %79 = vst [vmem:[#allocation2] sm:$0xff] 0.0
    %80 = vst [vmem:[#allocation3] sm:$0xff] 0.0
  $region13: #{seg_loss.1} parent=0 // pred_fallthru
    _
  %v81 = vld [vmem:[%s58] sm:$0xff]
  %v82 = vld [vmem:[%s58 + $0x8] sm:$0xff]
  %v83 = vld [vmem:[%s70] sm:$0xff]
  %v84 = vld [vmem:[%s70 + $0x8] sm:$0xff]
  %vm85 = vcmp.ne.f32.partialorder %v83, 255.0
  %vm86 = vcmp.ne.f32.partialorder %v84, 255.0
  %v87 = vmax.f32 %v81, 0.0
  %v88 = vmax.f32 %v82, 0.0
  %v89 = vmul.f32 %v81, %v83
  %v90 = vmul.f32 %v82, %v84
  %v91 = vsub.f32 %v87, %v89
  %v92 = vsub.f32 %v88, %v90
  %v93 = vand.u32 2147483647, %v81
  %v94 = vand.u32 2147483647, %v82
  %v95 = vsub.f32 0.0, %v93
  %v96 = vsub.f32 0.0, %v94
  %v97 = vmul.f32 %v95, 1.442695
  %v98 = vpow.pop %v97
  %v99 = vmul.f32 %v96, 1.442695
  %v100 = vpow.pop %v99
  %v101 = vadd.f32 %v98, 1.0
  %v102 = vlog2.pop %v101
  %v103 = vmul.f32 %v102, 0.6931472
  %v104 = vmul.f32 -0.5, %v98
  %v105 = vadd.f32 %v104, 1.0
  %v106 = vmul.f32 %v105, %v98
  %v107 = vand.u32 2147483647, %v98
  %vm108 = vcmp.lt.f32.partialorder %v107, 0.0004427343
  %v109 = vsel %vm108, %v106, %v103
  %v110 = vadd.f32 %v100, 1.0
  %v111 = vlog2.pop %v110
  %v112 = vmul.f32 %v111, 0.6931472
  %v113 = vmul.f32 -0.5, %v100
  %v114 = vadd.f32 %v113, 1.0
  %v115 = vmul.f32 %v114, %v100
  %v116 = vand.u32 2147483647, %v100
  %vm117 = vcmp.lt.f32.partialorder %v116, 0.0004427343
  %v118 = vsel %vm117, %v115, %v112
  %v119 = vadd.f32 %v91, %v109
  %v120 = vadd.f32 %v92, %v118
  %v121 = vsel %vm85, 1.0, 0.0
  %v122 = vsel %vm86, 1.0, 0.0
  %v123 = vsel %vm85, %v119, 0.0
  %v124 = vsel %vm86, %v120, 0.0
  %v125 = vadd.f32 %v123, %v124
  %v126 = vadd.f32 %v121, %v122
  %v127 = vld [vmem:[#allocation2] sm:$0xff]
  %v128 = vadd.f32 %v127, %v125
  %129 = vst [vmem:[#allocation2] sm:$0xff] %v128
  %v130 = vld [vmem:[#allocation3] sm:$0xff]
  %v131 = vadd.f32 %v130, %v126
  %132 = vst [vmem:[#allocation3] sm:$0xff] %v131
  // Predicated region
  $region14: #{seg_loss.1} parent=0 // pred_check
    %p133 = pneg %p75
  $region15: #{seg_loss.1} parent=0 // pred_check_branch
    %135 = sbr.rel (%p133) target = $region17
  $region16: #{seg_loss.1} parent=0 // pred_region
    %v136 = vld [vmem:[#allocation2] sm:$0xff]
    %137 = vst [vmem:[%s2] sm:$0xff] %v136
    %v138 = vld [vmem:[#allocation3] sm:$0xff]
    %139 = vst [vmem:[%s2 + $0x8] sm:$0xff] %v138
  $region17: #{seg_loss.1} parent=0 // pred_fallthru
    _
  // Predicated region
  $region18: #{seg_loss.1} parent=0 // pred_check
    _
  $region19: #{seg_loss.1} parent=0 // pred_check_branch
    %141 = sbr.rel (0) target = $region21
  $region20: #{seg_loss.1} parent=0 // pred_region
    _
  $region21: #{seg_loss.1} parent=0 // pred_fallthru
    _
  // Predicated region
  $region22: #{seg_loss.1} parent=0 // pred_check
    _
  $region23: #{seg_loss.1} parent=0 // pred_check_branch
    %143 = sbr.rel (0) target = $region25
  $region24: #{seg_loss.1} parent=0 // pred_region
    _
  $region25: #{seg_loss.1} parent=0 // pred_fallthru
    _

</llo_original>
